<compile_context>
chip_gen: v7x
topology: tpu7x:2x2x1
jax: 0.10.0
libtpu: 0.0.40
codegen_flags: <defaults>
</compile_context>

<pallas_src>
import functools

import jax
import jax.numpy as jnp
from jax.experimental import pallas as pl
from jax.experimental.pallas import tpu as pltpu

_LANE = 128   # lane width (last dim)
_ROW = 16     # row granularity: sublane(8) x bf16 sublane-packing(2)


def _cdiv(a, b):
    return -(-a // b)


def _round_up(v, m):
    return _cdiv(v, m) * m


def _detect_bf16_eup():
    """bf16 VPU/EUP exists on v6e (Trillium) and newer; keep f32 on v5e/v5p/v4."""
    try:
        kind = jax.devices()[0].device_kind.lower()
    except Exception:  # pragma: no cover - backend not initialised
        return False
    return any(tag in kind for tag in ("v6", "v7", "tpu7", "trillium"))


_BF16_ACT = _detect_bf16_eup()


def _softplus(z):
    # Numerically stable softplus, matches PyTorch nn.Softplus (beta=1).
    # log(1 + exp(-|z|)) instead of log1p: identical at the tolerances used and
    # lowers via plain exp/log on every TPU generation (incl. bf16 path).
    return jnp.maximum(z, 0.0) + jnp.log(1.0 + jnp.exp(-jnp.abs(z)))


def _mlp_kernel(x_ref, w1_ref, b1_ref, w2_ref, b2_ref, w3_ref, b3_ref,
                w4_ref, b4_ref, o_ref, *, n_chunks, chunk_rows, bf16_act):
    act_dtype = jnp.bfloat16 if bf16_act else jnp.float32

    # Weights/biases use a constant index_map (resident in VMEM); read once.
    w1, w2, w3, w4 = w1_ref[...], w2_ref[...], w3_ref[...], w4_ref[...]
    b1, b2, b3, b4 = b1_ref[...], b2_ref[...], b3_ref[...], b4_ref[...]

    # Independent row sub-chunks: the per-chunk dot -> softplus chains have no
    # cross-chunk deps, so MXU (next chunk's matmuls) and EUP (this chunk's
    # softplus) co-issue instead of serializing.
    for c in range(n_chunks):
        r0 = c * chunk_rows
        x = x_ref[pl.ds(r0, chunk_rows), :].astype(jnp.bfloat16)

        h = jnp.dot(x, w1, preferred_element_type=jnp.float32) + b1
        h = _softplus(h.astype(act_dtype))

        h = jnp.dot(h.astype(jnp.bfloat16), w2,
                    preferred_element_type=jnp.float32) + b2
        h = _softplus(h.astype(act_dtype))

        h = jnp.dot(h.astype(jnp.bfloat16), w3,
                    preferred_element_type=jnp.float32) + b3
        h = _softplus(h.astype(act_dtype))

        out = jnp.dot(h.astype(jnp.bfloat16), w4,
                      preferred_element_type=jnp.float32) + b4
        o_ref[pl.ds(r0, chunk_rows), :] = out.astype(o_ref.dtype)


def prepare_params(params):
    """Pad + bf16-cast the weights ONCE, outside the per-call forward."""
    w1, b1 = params["w1"], params["b1"]
    w2, b2 = params["w2"], params["b2"]
    w3, b3 = params["w3"], params["b3"]
    w4, b4 = params["w4"], params["b4"]

    x_in, h_dim = w1.shape
    x_out = w4.shape[1]
    x_in_p = _round_up(x_in, 8)        # usually a no-op
    h_p = _round_up(h_dim, _LANE)      # 128 is enough: kernel is EUP-bound
    # Output feature dim stays unpadded (full-dim BlockSpec exemption).

    def pad2(a, rows, cols, dtype):
        pr, pc = rows - a.shape[0], cols - a.shape[1]
        if pr or pc:
            a = jnp.pad(a, ((0, pr), (0, pc)))   # zero pad (required invariant)
        return a.astype(dtype)

    return dict(
        w1=pad2(w1, x_in_p, h_p, jnp.bfloat16), b1=pad2(b1, 1, h_p, jnp.float32),
        w2=pad2(w2, h_p, h_p, jnp.bfloat16),    b2=pad2(b2, 1, h_p, jnp.float32),
        w3=pad2(w3, h_p, h_p, jnp.bfloat16),    b3=pad2(b3, 1, h_p, jnp.float32),
        w4=pad2(w4, h_p, x_out, jnp.bfloat16),  b4=pad2(b4, 1, x_out, jnp.float32),
    )


@functools.partial(jax.jit, static_argnames=("tile_n",))
def model_latent_f(x, prepared, *, tile_n=2048):
    """Fused forward pass of ModelLatentF.

    x:        (N, x_in) float32
    prepared: output of prepare_params (padded / bf16 weights, f32 biases)
    """
    w1p, b1p = prepared["w1"], prepared["b1"]
    w2p, b2p = prepared["w2"], prepared["b2"]
    w3p, b3p = prepared["w3"], prepared["b3"]
    w4p, b4p = prepared["w4"], prepared["b4"]

    n, x_in = x.shape
    x_in_p, h_p = w1p.shape
    x_out = w4p.shape[1]

    # --- batch tiling -------------------------------------------------------
    tile_n = max(_ROW, (tile_n // _ROW) * _ROW)
    num_tiles = _cdiv(n, tile_n)
    if num_tiles == 1 and n >= 256:
        num_tiles = 2                    # >=2 parallel steps -> both v7x TCs
    block_n = _round_up(_cdiv(n, num_tiles), _ROW)   # minimize pad waste
    grid_n = _cdiv(n, block_n)
    n_p = grid_n * block_n

    # --- intra-block sub-chunking (MXU/EUP overlap) -------------------------
    n_chunks = 1
    for c in (4, 2):
        sub = block_n // c
        if block_n % c == 0 and sub >= 128 and sub % _ROW == 0:
            n_chunks = c
            break
    chunk_rows = block_n // n_chunks

    # --- x: no lane padding in HBM; pad rows (and cast to bf16, fused) only
    #     when the batch does not divide evenly ------------------------------
    need_pad = (n_p != n) or (x_in_p != x_in)
    if need_pad:
        xp = jnp.pad(x, ((0, n_p - n), (0, x_in_p - x_in))).astype(jnp.bfloat16)
    else:
        xp = x   # f32, cast to bf16 per-chunk inside the kernel

    # --- cost estimate (lets XLA schedule surrounding ops) ------------------
    flops = 2 * n_p * h_p * (x_in_p + 2 * h_p + x_out)
    transcendentals = 3 * 2 * n_p * h_p          # exp + log per softplus elem
    param_bytes = sum(int(p.size) * p.dtype.itemsize
                      for p in (w1p, b1p, w2p, b2p, w3p, b3p, w4p, b4p))
    bytes_accessed = (int(xp.size) * xp.dtype.itemsize + param_bytes
                      + n_p * x_out * 4)

    kernel = functools.partial(_mlp_kernel, n_chunks=n_chunks,
                               chunk_rows=chunk_rows, bf16_act=_BF16_ACT)

    # Weights/biases: same full block every grid step (stay resident in VMEM).
    full = lambda shape: pl.BlockSpec(shape, lambda i: (0, 0))

    out = pl.pallas_call(
        kernel,
        out_shape=jax.ShapeDtypeStruct((n_p, x_out), jnp.float32),
        grid_spec=pltpu.PrefetchScalarGridSpec(
            num_scalar_prefetch=0,
            grid=(grid_n,),
            in_specs=[
                pl.BlockSpec((block_n, x_in_p), lambda i: (i, 0)),  # x tile
                full((x_in_p, h_p)), full((1, h_p)),                # layer 1
                full((h_p, h_p)), full((1, h_p)),                   # layer 2
                full((h_p, h_p)), full((1, h_p)),                   # layer 3
                full((h_p, x_out)), full((1, x_out)),               # layer 4
            ],
            out_specs=pl.BlockSpec((block_n, x_out), lambda i: (i, 0)),
        ),
        compiler_params=pltpu.CompilerParams(
            dimension_semantics=("parallel",)),
        cost_estimate=pl.CostEstimate(flops=flops,
                                      transcendentals=transcendentals,
                                      bytes_accessed=bytes_accessed),
    )(xp, w1p, b1p, w2p, b2p, w3p, b3p, w4p, b4p)

    # Only a row slice (and only when the batch was padded); feature dim is
    # already exact.
    return out[:n] if n_p != n else out


def init_params(key, x_in, h_dim, x_out):
    """Deterministic synthetic init (PyTorch-style uniform fan-in bound)."""
    keys = jax.random.split(key, 8)

    def linear(kw, kb, fan_in, fan_out):
        bound = 1.0 / jnp.sqrt(float(fan_in))
        w = jax.random.uniform(kw, (fan_in, fan_out), jnp.float32, -bound, bound)
        b = jax.random.uniform(kb, (1, fan_out), jnp.float32, -bound, bound)
        return w, b

    w1, b1 = linear(keys[0], keys[1], x_in, h_dim)
    w2, b2 = linear(keys[2], keys[3], h_dim, h_dim)
    w3, b3 = linear(keys[4], keys[5], h_dim, h_dim)
    w4, b4 = linear(keys[6], keys[7], h_dim, x_out)
    return dict(w1=w1, b1=b1, w2=w2, b2=b2, w3=w3, b3=b3, w4=w4, b4=b4)


def reference_forward(x, params):
    """Plain-JAX f32 reference of ModelLatentF.forward."""
    h = jax.nn.softplus(x @ params["w1"] + params["b1"])
    h = jax.nn.softplus(h @ params["w2"] + params["b2"])
    h = jax.nn.softplus(h @ params["w3"] + params["b3"])
    return h @ params["w4"] + params["b4"]


if __name__ == "__main__":
    # Small shapes consistent with ModelLatentF(x_in, H, x_out).
    N, X_IN, H, X_OUT = 16, 16, 32, 8

    key = jax.random.PRNGKey(0)
    k_x, k_p = jax.random.split(key)

    x = jax.random.normal(k_x, (N, X_IN), dtype=jnp.float32)
    params = init_params(k_p, X_IN, H, X_OUT)
    prepared = prepare_params(params)          # pad + bf16-cast weights once

    out = model_latent_f(x, prepared)
    out = jax.block_until_ready(out)

    ref = reference_forward(x, params)
    assert out.shape == (N, X_OUT)
    # bf16 MXU operands (and bf16 softplus on v6e/v7x) with f32 accumulation.
    assert jnp.allclose(out, ref, atol=3e-2, rtol=3e-2), "mismatch vs reference"

    print("KERNEL_OK")
</pallas_src>

<mosaic_0001>
module attributes {stable_mosaic.version = 11 : i64} {
  func.func @_mlp_kernel(%arg0: i32, %arg1: memref<16x16xf32, #tpu.memory_space<vmem>>, %arg2: memref<16x128xbf16, #tpu.memory_space<vmem>>, %arg3: memref<1x128xf32, #tpu.memory_space<vmem>>, %arg4: memref<128x128xbf16, #tpu.memory_space<vmem>>, %arg5: memref<1x128xf32, #tpu.memory_space<vmem>>, %arg6: memref<128x128xbf16, #tpu.memory_space<vmem>>, %arg7: memref<1x128xf32, #tpu.memory_space<vmem>>, %arg8: memref<128x8xbf16, #tpu.memory_space<vmem>>, %arg9: memref<1x8xf32, #tpu.memory_space<vmem>>, %arg10: memref<16x8xf32, #tpu.memory_space<vmem>>) attributes {dimension_semantics = [#tpu.dimension_semantics<parallel>], iteration_bounds = array<i64: 1>, scalar_prefetch = 0 : i64, scratch_operands = 0 : i64, tpu.core_type = #tpu.core_type<tc>, window_params = [{transform_indices = @transform_0, window_bounds = array<i64: 16, 16>}, {pipeline_mode = #tpu.pipeline_mode<synchronous>, transform_indices = @transform_1, window_bounds = array<i64: 16, 128>}, {pipeline_mode = #tpu.pipeline_mode<synchronous>, transform_indices = @transform_2, window_bounds = array<i64: 1, 128>}, {pipeline_mode = #tpu.pipeline_mode<synchronous>, transform_indices = @transform_3, window_bounds = array<i64: 128, 128>}, {pipeline_mode = #tpu.pipeline_mode<synchronous>, transform_indices = @transform_4, window_bounds = array<i64: 1, 128>}, {pipeline_mode = #tpu.pipeline_mode<synchronous>, transform_indices = @transform_5, window_bounds = array<i64: 128, 128>}, {pipeline_mode = #tpu.pipeline_mode<synchronous>, transform_indices = @transform_6, window_bounds = array<i64: 1, 128>}, {pipeline_mode = #tpu.pipeline_mode<synchronous>, transform_indices = @transform_7, window_bounds = array<i64: 128, 8>}, {pipeline_mode = #tpu.pipeline_mode<synchronous>, transform_indices = @transform_8, window_bounds = array<i64: 1, 8>}, {transform_indices = @transform_9, window_bounds = array<i64: 16, 8>}]} {
    %c0 = arith.constant 0 : index
    %c0_0 = arith.constant 0 : index
    %0 = vector.load %arg2[%c0, %c0_0] : memref<16x128xbf16, #tpu.memory_space<vmem>>, vector<16x128xbf16>
    %c0_1 = arith.constant 0 : index
    %c0_2 = arith.constant 0 : index
    %1 = vector.load %arg4[%c0_1, %c0_2] : memref<128x128xbf16, #tpu.memory_space<vmem>>, vector<128x128xbf16>
    %c0_3 = arith.constant 0 : index
    %c0_4 = arith.constant 0 : index
    %2 = vector.load %arg6[%c0_3, %c0_4] : memref<128x128xbf16, #tpu.memory_space<vmem>>, vector<128x128xbf16>
    %c0_5 = arith.constant 0 : index
    %c0_6 = arith.constant 0 : index
    %3 = vector.load %arg8[%c0_5, %c0_6] : memref<128x8xbf16, #tpu.memory_space<vmem>>, vector<128x8xbf16>
    %c0_7 = arith.constant 0 : index
    %c0_8 = arith.constant 0 : index
    %4 = vector.load %arg3[%c0_7, %c0_8] : memref<1x128xf32, #tpu.memory_space<vmem>>, vector<1x128xf32>
    %c0_9 = arith.constant 0 : index
    %c0_10 = arith.constant 0 : index
    %5 = vector.load %arg5[%c0_9, %c0_10] : memref<1x128xf32, #tpu.memory_space<vmem>>, vector<1x128xf32>
    %c0_11 = arith.constant 0 : index
    %c0_12 = arith.constant 0 : index
    %6 = vector.load %arg7[%c0_11, %c0_12] : memref<1x128xf32, #tpu.memory_space<vmem>>, vector<1x128xf32>
    %c0_13 = arith.constant 0 : index
    %c0_14 = arith.constant 0 : index
    %7 = vector.load %arg9[%c0_13, %c0_14] : memref<1x8xf32, #tpu.memory_space<vmem>>, vector<1x8xf32>
    %c0_15 = arith.constant 0 : index
    %c0_16 = arith.constant 0 : index
    %8 = vector.load %arg1[%c0_15, %c0_16] : memref<16x16xf32, #tpu.memory_space<vmem>>, vector<16x16xf32>
    %9 = arith.truncf %8 : vector<16x16xf32> to vector<16x16xbf16>
    %cst = arith.constant dense<0.000000e+00> : vector<16x128xf32>
    %10 = tpu.matmul %9, %0, %cst {dimension_numbers = #tpu.dot_dimension_numbers<[1], [0], [0], [1], [0, 0, 1, 1], [], []>} : vector<16x16xbf16>, vector<16x128xbf16>, vector<16x128xf32> -> vector<16x128xf32>
    %11 = vector.broadcast %4 : vector<1x128xf32> to vector<16x128xf32>
    %12 = arith.addf %10, %11 : vector<16x128xf32>
    %cst_17 = arith.constant 0.000000e+00 : f32
    %13 = vector.broadcast %cst_17 : f32 to vector<16x128xf32>
    %14 = arith.maximumf %12, %13 : vector<16x128xf32>
    %15 = math.absf %12 : vector<16x128xf32>
    %cst_18 = arith.constant 0.000000e+00 : f32
    %16 = vector.broadcast %cst_18 : f32 to vector<16x128xf32>
    %17 = arith.subf %16, %15 : vector<16x128xf32>
    %18 = math.exp %17 : vector<16x128xf32>
    %cst_19 = arith.constant 1.000000e+00 : f32
    %19 = vector.broadcast %cst_19 : f32 to vector<16x128xf32>
    %20 = arith.addf %19, %18 : vector<16x128xf32>
    %21 = math.log %20 : vector<16x128xf32>
    %22 = arith.addf %14, %21 : vector<16x128xf32>
    %23 = arith.truncf %22 : vector<16x128xf32> to vector<16x128xbf16>
    %cst_20 = arith.constant dense<0.000000e+00> : vector<16x128xf32>
    %24 = tpu.matmul %23, %1, %cst_20 {dimension_numbers = #tpu.dot_dimension_numbers<[1], [0], [0], [1], [0, 0, 1, 1], [], []>} : vector<16x128xbf16>, vector<128x128xbf16>, vector<16x128xf32> -> vector<16x128xf32>
    %25 = vector.broadcast %5 : vector<1x128xf32> to vector<16x128xf32>
    %26 = arith.addf %24, %25 : vector<16x128xf32>
    %cst_21 = arith.constant 0.000000e+00 : f32
    %27 = vector.broadcast %cst_21 : f32 to vector<16x128xf32>
    %28 = arith.maximumf %26, %27 : vector<16x128xf32>
    %29 = math.absf %26 : vector<16x128xf32>
    %cst_22 = arith.constant 0.000000e+00 : f32
    %30 = vector.broadcast %cst_22 : f32 to vector<16x128xf32>
    %31 = arith.subf %30, %29 : vector<16x128xf32>
    %32 = math.exp %31 : vector<16x128xf32>
    %cst_23 = arith.constant 1.000000e+00 : f32
    %33 = vector.broadcast %cst_23 : f32 to vector<16x128xf32>
    %34 = arith.addf %33, %32 : vector<16x128xf32>
    %35 = math.log %34 : vector<16x128xf32>
    %36 = arith.addf %28, %35 : vector<16x128xf32>
    %37 = arith.truncf %36 : vector<16x128xf32> to vector<16x128xbf16>
    %cst_24 = arith.constant dense<0.000000e+00> : vector<16x128xf32>
    %38 = tpu.matmul %37, %2, %cst_24 {dimension_numbers = #tpu.dot_dimension_numbers<[1], [0], [0], [1], [0, 0, 1, 1], [], []>} : vector<16x128xbf16>, vector<128x128xbf16>, vector<16x128xf32> -> vector<16x128xf32>
    %39 = vector.broadcast %6 : vector<1x128xf32> to vector<16x128xf32>
    %40 = arith.addf %38, %39 : vector<16x128xf32>
    %cst_25 = arith.constant 0.000000e+00 : f32
    %41 = vector.broadcast %cst_25 : f32 to vector<16x128xf32>
    %42 = arith.maximumf %40, %41 : vector<16x128xf32>
    %43 = math.absf %40 : vector<16x128xf32>
    %cst_26 = arith.constant 0.000000e+00 : f32
    %44 = vector.broadcast %cst_26 : f32 to vector<16x128xf32>
    %45 = arith.subf %44, %43 : vector<16x128xf32>
    %46 = math.exp %45 : vector<16x128xf32>
    %cst_27 = arith.constant 1.000000e+00 : f32
    %47 = vector.broadcast %cst_27 : f32 to vector<16x128xf32>
    %48 = arith.addf %47, %46 : vector<16x128xf32>
    %49 = math.log %48 : vector<16x128xf32>
    %50 = arith.addf %42, %49 : vector<16x128xf32>
    %51 = arith.truncf %50 : vector<16x128xf32> to vector<16x128xbf16>
    %cst_28 = arith.constant dense<0.000000e+00> : vector<16x8xf32>
    %52 = tpu.matmul %51, %3, %cst_28 {dimension_numbers = #tpu.dot_dimension_numbers<[1], [0], [0], [1], [0, 0, 1, 1], [], []>} : vector<16x128xbf16>, vector<128x8xbf16>, vector<16x8xf32> -> vector<16x8xf32>
    %53 = vector.broadcast %7 : vector<1x8xf32> to vector<16x8xf32>
    %54 = arith.addf %52, %53 : vector<16x8xf32>
    %c0_29 = arith.constant 0 : index
    %c0_30 = arith.constant 0 : index
    %55 = vector.load %arg10[%c0_29, %c0_30] : memref<16x8xf32, #tpu.memory_space<vmem>>, vector<16x8xf32>
    tpu.vector_store %arg10[%c0_29, %c0_30], %54 {strides = array<i32>} : memref<16x8xf32, #tpu.memory_space<vmem>>, vector<16x8xf32>,
    return
  }
  func.func @transform_0(%arg0: i32) -> (i32, i32) {
    %c0_i32 = arith.constant 0 : i32
    %c0_i32_0 = arith.constant 0 : i32
    return %arg0, %c0_i32 : i32, i32
  }
  func.func @transform_1(%arg0: i32) -> (i32, i32) {
    %c0_i32 = arith.constant 0 : i32
    %c0_i32_0 = arith.constant 0 : i32
    %c0_i32_1 = arith.constant 0 : i32
    return %c0_i32, %c0_i32_0 : i32, i32
  }
  func.func @transform_2(%arg0: i32) -> (i32, i32) {
    %c0_i32 = arith.constant 0 : i32
    %c0_i32_0 = arith.constant 0 : i32
    %c0_i32_1 = arith.constant 0 : i32
    return %c0_i32, %c0_i32_0 : i32, i32
  }
  func.func @transform_3(%arg0: i32) -> (i32, i32) {
    %c0_i32 = arith.constant 0 : i32
    %c0_i32_0 = arith.constant 0 : i32
    %c0_i32_1 = arith.constant 0 : i32
    return %c0_i32, %c0_i32_0 : i32, i32
  }
  func.func @transform_4(%arg0: i32) -> (i32, i32) {
    %c0_i32 = arith.constant 0 : i32
    %c0_i32_0 = arith.constant 0 : i32
    %c0_i32_1 = arith.constant 0 : i32
    return %c0_i32, %c0_i32_0 : i32, i32
  }
  func.func @transform_5(%arg0: i32) -> (i32, i32) {
    %c0_i32 = arith.constant 0 : i32
    %c0_i32_0 = arith.constant 0 : i32
    %c0_i32_1 = arith.constant 0 : i32
    return %c0_i32, %c0_i32_0 : i32, i32
  }
  func.func @transform_6(%arg0: i32) -> (i32, i32) {
    %c0_i32 = arith.constant 0 : i32
    %c0_i32_0 = arith.constant 0 : i32
    %c0_i32_1 = arith.constant 0 : i32
    return %c0_i32, %c0_i32_0 : i32, i32
  }
  func.func @transform_7(%arg0: i32) -> (i32, i32) {
    %c0_i32 = arith.constant 0 : i32
    %c0_i32_0 = arith.constant 0 : i32
    %c0_i32_1 = arith.constant 0 : i32
    return %c0_i32, %c0_i32_0 : i32, i32
  }
  func.func @transform_8(%arg0: i32) -> (i32, i32) {
    %c0_i32 = arith.constant 0 : i32
    %c0_i32_0 = arith.constant 0 : i32
    %c0_i32_1 = arith.constant 0 : i32
    return %c0_i32, %c0_i32_0 : i32, i32
  }
  func.func @transform_9(%arg0: i32) -> (i32, i32) {
    %c0_i32 = arith.constant 0 : i32
    %c0_i32_0 = arith.constant 0 : i32
    return %arg0, %c0_i32 : i32, i32
  }
}

</mosaic_0001>

<llo_original>
// kernel: model_latent_f.1
$region0: #{model_latent_f.1}
  #allocation0 [shape = 'u32[]', space=smem, size = 0x4, offset = 0x4, fixed_abs, tag = 'smem constant byte address 0x4 - core index']
  #allocation1 [shape = 'u32[144,128]{1,0:T(1,128)}', space=vmem, size = 0x12000, scoped, tag = 'internal scratch']
  %s0 = inlined_call_operand.vmem [shape: f32[16,16], index: 0, kind: input, shape index: {}]
  %s1 = inlined_call_operand.vmem [shape: bf16[16,128], index: 1, kind: input, shape index: {}]
  %s2 = inlined_call_operand.vmem [shape: f32[1,128], index: 2, kind: input, shape index: {}]
  %s3 = inlined_call_operand.vmem [shape: bf16[128,128], index: 3, kind: input, shape index: {}]
  %s4 = inlined_call_operand.vmem [shape: f32[1,128], index: 4, kind: input, shape index: {}]
  %s5 = inlined_call_operand.hbm [shape: bf16[128,128], index: 5, kind: input, shape index: {}]
  %s6 = inlined_call_operand.hbm [shape: f32[1,128], index: 6, kind: input, shape index: {}]
  %s7 = inlined_call_operand.vmem [shape: bf16[128,8], index: 7, kind: input, shape index: {}]
  %s8 = inlined_call_operand.hbm [shape: f32[1,8], index: 8, kind: input, shape index: {}]
  %s9 = inlined_call_operand.vmem [shape: f32[16,8], index: 9, kind: output, shape index: {}]
  %s10 = sld [smem:[#allocation0]]
  $region58: #{model_latent_f.1} parent=0
    _
  %s12 = ssub.s32 1, %s10
  %s13 = scalar_select 0, %s12, %s10
  $region1: #{model_latent_f.1} parent=0
    #allocation2 [shape = 'u8[32768]{0}', space=vmem, size = 0x8000, scoped, tag = 'input window, operand 5, single buffered']
    #allocation3 [shape = 's32[1]{0}', space=sflag, size = 0x4, scoped, tag = 'scoped memory for model_latent_f.1']
    #allocation4 [shape = 'u8[512]{0}', space=vmem, size = 0x400, scoped, tag = 'input window, operand 6, single buffered']
    #allocation5 [shape = 's32[1]{0}', space=sflag, size = 0x4, scoped, tag = 'scoped memory for model_latent_f.1']
    #allocation6 [shape = 'u8[512]{0}', space=vmem, size = 0x400, scoped, tag = 'input window, operand 8, single buffered']
    %14 = vsyncpa [#allocation3], 0
    %15 = vsyncpa [#allocation5], 0
    // Predicated region
    $region2: #{model_latent_f.1} parent=1 // pred_check
      _
    $region3: #{model_latent_f.1} parent=1 // pred_check_branch
      %17 = sbr.rel (0) target = $region5
    $region4: #{model_latent_f.1} parent=1 // pred_region
      _
    $region5: #{model_latent_f.1} parent=1 // pred_fallthru
      _
    // Predicated region
    $region6: #{model_latent_f.1} parent=1 // pred_check
      _
    $region7: #{model_latent_f.1} parent=1 // pred_check_branch
      %19 = sbr.rel (0) target = $region9
    $region8: #{model_latent_f.1} parent=1 // pred_region
      _
    $region9: #{model_latent_f.1} parent=1 // pred_fallthru
      _
    // Predicated region
    $region10: #{model_latent_f.1} parent=1 // pred_check
      _
    $region11: #{model_latent_f.1} parent=1 // pred_check_branch
      %21 = sbr.rel (0) target = $region13
    $region12: #{model_latent_f.1} parent=1 // pred_region
      _
    $region13: #{model_latent_f.1} parent=1 // pred_fallthru
      _
    // Predicated region
    $region14: #{model_latent_f.1} parent=1 // pred_check
      _
    $region15: #{model_latent_f.1} parent=1 // pred_check_branch
      %23 = sbr.rel (0) target = $region17
    $region16: #{model_latent_f.1} parent=1 // pred_region
      _
    $region17: #{model_latent_f.1} parent=1 // pred_fallthru
      _
    // Predicated region
    $region18: #{model_latent_f.1} parent=1 // pred_check
      _
    $region19: #{model_latent_f.1} parent=1 // pred_check_branch
      %25 = sbr.rel (0) target = $region21
    $region20: #{model_latent_f.1} parent=1 // pred_region
      _
    $region21: #{model_latent_f.1} parent=1 // pred_fallthru
      _
    // Predicated region
    $region22: #{model_latent_f.1} parent=1 // pred_check
      _
    $region23: #{model_latent_f.1} parent=1 // pred_check_branch
      %27 = sbr.rel (0) target = $region25
    $region24: #{model_latent_f.1} parent=1 // pred_region
      %s29 = ssub.s32 1024, 1024
      %30 = vsyncadd [#allocation3], %s29
      %s31 = sshll.u32 [#allocation2], 4
      %s32 = int_to_ptr.vmem [resolvable:$true] %s31
      %37 = dma.hbm_to_vmem [thread:$0]  %s5, 1024, %s32, [#allocation3], 64, 64, 4
    $region25: #{model_latent_f.1} parent=1 // pred_fallthru
      _
    // Predicated region
    $region26: #{model_latent_f.1} parent=1 // pred_check
      _
    $region27: #{model_latent_f.1} parent=1 // pred_check_branch
      %39 = sbr.rel (0) target = $region29
    $region28: #{model_latent_f.1} parent=1 // pred_region
      %s41 = ssub.s32 16, 16
      %42 = vsyncadd [#allocation5], %s41
      %s44 = sshll.u32 [#allocation4], 4
      %s45 = int_to_ptr.vmem [resolvable:$true] %s44
      %47 = dma.hbm_to_vmem [thread:$0]  %s6, 16, %s45, [#allocation5]
    $region29: #{model_latent_f.1} parent=1 // pred_fallthru
      _
    // Predicated region
    $region30: #{model_latent_f.1} parent=1 // pred_check
      _
    $region31: #{model_latent_f.1} parent=1 // pred_check_branch
      %49 = sbr.rel (0) target = $region33
    $region32: #{model_latent_f.1} parent=1 // pred_region
      _
    $region33: #{model_latent_f.1} parent=1 // pred_fallthru
      _
    // Predicated region
    $region34: #{model_latent_f.1} parent=1 // pred_check
      _
    $region35: #{model_latent_f.1} parent=1 // pred_check_branch
      %51 = sbr.rel (0) target = $region37
    $region36: #{model_latent_f.1} parent=1 // pred_region
      %s53 = ssub.s32 16, 16
      %54 = vsyncadd [#allocation5], %s53
      %s56 = sshll.u32 [#allocation6], 4
      %s57 = int_to_ptr.vmem [resolvable:$true] %s56
      %59 = dma.hbm_to_vmem [thread:$0]  %s8, 16, %s57, [#allocation5]
    $region37: #{model_latent_f.1} parent=1 // pred_fallthru
      _
    // Predicated region
    $region38: #{model_latent_f.1} parent=1 // pred_check
      _
    $region39: #{model_latent_f.1} parent=1 // pred_check_branch
      %61 = sbr.rel (0) target = $region41
    $region40: #{model_latent_f.1} parent=1 // pred_region
      %62 = dma.done [#allocation3], 1024
    $region41: #{model_latent_f.1} parent=1 // pred_fallthru
      _
    // Predicated region
    $region42: #{model_latent_f.1} parent=1 // pred_check
      _
    $region43: #{model_latent_f.1} parent=1 // pred_check_branch
      %64 = sbr.rel (0) target = $region45
    $region44: #{model_latent_f.1} parent=1 // pred_region
      %65 = dma.done [#allocation5], 16
    $region45: #{model_latent_f.1} parent=1 // pred_fallthru
      _
    // Predicated region
    $region46: #{model_latent_f.1} parent=1 // pred_check
      _
    $region47: #{model_latent_f.1} parent=1 // pred_check_branch
      %67 = sbr.rel (0) target = $region49
    $region48: #{model_latent_f.1} parent=1 // pred_region
      %68 = dma.done [#allocation5], 16
    $region49: #{model_latent_f.1} parent=1 // pred_fallthru
      _
    %v70 = vld [vmem:[%s1] sm:$0xf]
    %v71 = vld [vmem:[%s1 + $0x4] sm:$0xf]
    %v72 = vld [vmem:[%s3] sm:$0xf]
    %v73 = vld [vmem:[%s3 + $0x4] sm:$0xf]
    %v74 = vld [vmem:[%s3 + $0x8] sm:$0xf]
    %v75 = vld [vmem:[%s3 + $0xc] sm:$0xf]
    %v76 = vld [vmem:[%s3 + $0x10] sm:$0xf]
    %v77 = vld [vmem:[%s3 + $0x14] sm:$0xf]
    %v78 = vld [vmem:[%s3 + $0x18] sm:$0xf]
    %v79 = vld [vmem:[%s3 + $0x1c] sm:$0xf]
    %v80 = vld [vmem:[%s3 + $0x20] sm:$0xf]
    %v81 = vld [vmem:[%s3 + $0x24] sm:$0xf]
    %v82 = vld [vmem:[%s3 + $0x28] sm:$0xf]
    %v83 = vld [vmem:[%s3 + $0x2c] sm:$0xf]
    %v84 = vld [vmem:[%s3 + $0x30] sm:$0xf]
    %v85 = vld [vmem:[%s3 + $0x34] sm:$0xf]
    %v86 = vld [vmem:[%s3 + $0x38] sm:$0xf]
    %v87 = vld [vmem:[%s3 + $0x3c] sm:$0xf]
    %v88 = vld [vmem:[#allocation2] sm:$0xf]
    %v89 = vld [vmem:[#allocation2 + $0x4] sm:$0xf]
    %v90 = vld [vmem:[#allocation2 + $0x8] sm:$0xf]
    %v91 = vld [vmem:[#allocation2 + $0xc] sm:$0xf]
    %v92 = vld [vmem:[#allocation2 + $0x10] sm:$0xf]
    %v93 = vld [vmem:[#allocation2 + $0x14] sm:$0xf]
    %v94 = vld [vmem:[#allocation2 + $0x18] sm:$0xf]
    %v95 = vld [vmem:[#allocation2 + $0x1c] sm:$0xf]
    %v96 = vld [vmem:[#allocation2 + $0x20] sm:$0xf]
    %v97 = vld [vmem:[#allocation2 + $0x24] sm:$0xf]
    %v98 = vld [vmem:[#allocation2 + $0x28] sm:$0xf]
    %v99 = vld [vmem:[#allocation2 + $0x2c] sm:$0xf]
    %v100 = vld [vmem:[#allocation2 + $0x30] sm:$0xf]
    %v101 = vld [vmem:[#allocation2 + $0x34] sm:$0xf]
    %v102 = vld [vmem:[#allocation2 + $0x38] sm:$0xf]
    %v103 = vld [vmem:[#allocation2 + $0x3c] sm:$0xf]
    %v104 = vld [vmem:[%s7] sm:$0xf]
    %v105 = vld [vmem:[%s7 + $0x4] sm:$0xf]
    %v106 = vld [vmem:[%s7 + $0x8] sm:$0xf]
    %v107 = vld [vmem:[%s7 + $0xc] sm:$0xf]
    %v108 = vld [vmem:[%s7 + $0x10] sm:$0xf]
    %v109 = vld [vmem:[%s7 + $0x14] sm:$0xf]
    %v110 = vld [vmem:[%s7 + $0x18] sm:$0xf]
    %v111 = vld [vmem:[%s7 + $0x1c] sm:$0xf]
    %v112 = vld [vmem:[%s7 + $0x20] sm:$0xf]
    %v113 = vld [vmem:[%s7 + $0x24] sm:$0xf]
    %v114 = vld [vmem:[%s7 + $0x28] sm:$0xf]
    %v115 = vld [vmem:[%s7 + $0x2c] sm:$0xf]
    %v116 = vld [vmem:[%s7 + $0x30] sm:$0xf]
    %v117 = vld [vmem:[%s7 + $0x34] sm:$0xf]
    %v118 = vld [vmem:[%s7 + $0x38] sm:$0xf]
    %v119 = vld [vmem:[%s7 + $0x3c] sm:$0xf]
    %v120 = vld [vmem:[%s2] sm:$0x1]
    %v121 = vld [vmem:[%s4] sm:$0x1]
    %v122 = vld [vmem:[#allocation4] sm:$0x1]
    %v123 = vld [vmem:[#allocation6] sm:$0x1]
    %v124 = vld [vmem:[%s0] sm:$0xff]
    %v125 = vld [vmem:[%s0 + $0x8] sm:$0xff]
    %v126 = vpack.c.bf16 %v125, %v124
    %v128 = vlaneseq
    %v129 = vshrl.u32 %v128, 7
    %v130 = vsub.s32 0, %v129
    %v131 = vrot.slane %v120, %v130
    %v135 = vunpack.c.l.b16 %v70
    %v136 = vunpack.c.l.b16 %v71
    %v137 = vpack.c.b16 %v136, %v135
    %vm139 = vcmask 130048
    %v141 = vsel %vm139, %v126, 0
    %143 = vmatprep.subr.bf16.mxu0 0
    %144 = vmatpush1.bf16.msra.mxu0 %v137
    %145 = vmatprep.subr.bf16.mxu0 0
    %146 = vmatpush1.bf16.msra.mxu0 0
    %147 = vmatprep.subr.bf16.mxu0 0
    %148 = vmatpush1.bf16.msra.mxu0 0
    %149 = vmatprep.subr.bf16.mxu0 0
    %150 = vmatpush1.bf16.msra.mxu0 0
    %151 = vmatprep.subr.bf16.mxu0 0
    %152 = vmatpush1.bf16.msra.mxu0 0
    %153 = vmatprep.subr.bf16.mxu0 0
    %154 = vmatpush1.bf16.msra.mxu0 0
    %155 = vmatprep.subr.bf16.mxu0 0
    %156 = vmatpush1.bf16.msra.mxu0 0
    %157 = vmatprep.subr.bf16.mxu0 0
    %158 = vmatpush1.bf16.msra.mxu0 0
    %159 = vmatprep.subr.bf16.mxu0 0
    %160 = vmatpush1.bf16.msra.mxu0 0
    %161 = vmatprep.subr.bf16.mxu0 0
    %162 = vmatpush1.bf16.msra.mxu0 0
    %163 = vmatprep.subr.bf16.mxu0 0
    %164 = vmatpush1.bf16.msra.mxu0 0
    %165 = vmatprep.subr.bf16.mxu0 0
    %166 = vmatpush1.bf16.msra.mxu0 0
    %167 = vmatprep.subr.bf16.mxu0 0
    %168 = vmatpush1.bf16.msra.mxu0 0
    %169 = vmatprep.subr.bf16.mxu0 0
    %170 = vmatpush1.bf16.msra.mxu0 0
    %171 = vmatprep.subr.bf16.mxu0 0
    %172 = vmatpush1.bf16.msra.mxu0 0
    %173 = vmatprep.subr.bf16.mxu0 0
    %174 = vmatpush1.bf16.msra.mxu0 0
    %175 = vmatprep.mubr.bf16.mxu0 0
    %176 = vmatmul.mubr.bf16.gmra.mrb[0].mxu0 %v141
    %v177 = vpop.f32.mrb[0].mxu0
    %v178 = vadd.f32 %v131, %v177
    %v179 = vpop.f32.mrb[0].mxu0
    %v180 = vpop.f32.mrb[0].mxu0
    %v181 = vadd.f32 %v131, %v180
    %v182 = vpop.f32.mrb[0].mxu0
    %183 = vdwg.mxu0
    %v184 = vmax.f32 %v178, 0.0
    %v185 = vmax.f32 %v181, 0.0
    %v186 = vand.u32 2147483647, %v178
    %v187 = vand.u32 2147483647, %v181
    %v188 = vsub.f32 0.0, %v186
    %v189 = vsub.f32 0.0, %v187
    %v190 = vmul.f32 %v188, 1.442695
    %v191 = vpow.pop %v190
    %v192 = vmul.f32 %v189, 1.442695
    %v193 = vpow.pop %v192
    %v194 = vadd.f32 %v191, 1.0
    %v195 = vadd.f32 %v193, 1.0
    %v196 = vlog2.pop %v194
    %v197 = vmul.f32 %v196, 0.6931472
    %v198 = vlog2.pop %v195
    %v199 = vmul.f32 %v198, 0.6931472
    %v200 = vadd.f32 %v184, %v197
    %v201 = vadd.f32 %v185, %v199
    %v202 = vpack.c.bf16 %v201, %v200
    %v204 = vlaneseq
    %v205 = vshrl.u32 %v204, 7
    %v206 = vsub.s32 0, %v205
    %v207 = vrot.slane %v121, %v206
    %v225 = vunpack.c.l.b16 %v72
    %v226 = vunpack.c.l.b16 %v73
    %v227 = vunpack.c.l.b16 %v74
    %v228 = vunpack.c.l.b16 %v75
    %v229 = vunpack.c.l.b16 %v76
    %v230 = vunpack.c.l.b16 %v77
    %v231 = vunpack.c.l.b16 %v78
    %v232 = vunpack.c.l.b16 %v79
    %v233 = vunpack.c.l.b16 %v80
    %v234 = vunpack.c.l.b16 %v81
    %v235 = vunpack.c.l.b16 %v82
    %v236 = vunpack.c.l.b16 %v83
    %v237 = vunpack.c.l.b16 %v84
    %v238 = vunpack.c.l.b16 %v85
    %v239 = vunpack.c.l.b16 %v86
    %v240 = vunpack.c.l.b16 %v87
    %v241 = vpack.c.b16 %v226, %v225
    %v242 = vpack.c.b16 %v228, %v227
    %v243 = vpack.c.b16 %v230, %v229
    %v244 = vpack.c.b16 %v232, %v231
    %v245 = vpack.c.b16 %v234, %v233
    %v246 = vpack.c.b16 %v236, %v235
    %v247 = vpack.c.b16 %v238, %v237
    %v248 = vpack.c.b16 %v240, %v239
    %257 = vmatprep.subr.bf16.mxu0 0
    %258 = vmatpush1.bf16.msra.mxu0 %v241
    %259 = vmatprep.subr.bf16.mxu0 0
    %260 = vmatpush1.bf16.msra.mxu0 %v242
    %261 = vmatprep.subr.bf16.mxu0 0
    %262 = vmatpush1.bf16.msra.mxu0 %v243
    %263 = vmatprep.subr.bf16.mxu0 0
    %264 = vmatpush1.bf16.msra.mxu0 %v244
    %265 = vmatprep.subr.bf16.mxu0 0
    %266 = vmatpush1.bf16.msra.mxu0 %v245
    %267 = vmatprep.subr.bf16.mxu0 0
    %268 = vmatpush1.bf16.msra.mxu0 %v246
    %269 = vmatprep.subr.bf16.mxu0 0
    %270 = vmatpush1.bf16.msra.mxu0 %v247
    %271 = vmatprep.subr.bf16.mxu0 0
    %272 = vmatpush1.bf16.msra.mxu0 %v248
    %273 = vmatprep.subr.bf16.mxu0 0
    %274 = vmatpush1.bf16.msra.mxu0 0
    %275 = vmatprep.subr.bf16.mxu0 0
    %276 = vmatpush1.bf16.msra.mxu0 0
    %277 = vmatprep.subr.bf16.mxu0 0
    %278 = vmatpush1.bf16.msra.mxu0 0
    %279 = vmatprep.subr.bf16.mxu0 0
    %280 = vmatpush1.bf16.msra.mxu0 0
    %281 = vmatprep.subr.bf16.mxu0 0
    %282 = vmatpush1.bf16.msra.mxu0 0
    %283 = vmatprep.subr.bf16.mxu0 0
    %284 = vmatpush1.bf16.msra.mxu0 0
    %285 = vmatprep.subr.bf16.mxu0 0
    %286 = vmatpush1.bf16.msra.mxu0 0
    %287 = vmatprep.subr.bf16.mxu0 0
    %288 = vmatpush1.bf16.msra.mxu0 0
    %289 = vmatprep.mubr.bf16.mxu0 0
    %290 = vmatmul.mubr.bf16.gmra.mrb[0].mxu0 %v202
    %v291 = vpop.f32.mrb[0].mxu0
    %v292 = vadd.f32 %v207, %v291
    %v293 = vpop.f32.mrb[0].mxu0
    %v294 = vpop.f32.mrb[0].mxu0
    %v295 = vadd.f32 %v207, %v294
    %v296 = vpop.f32.mrb[0].mxu0
    %297 = vdwg.mxu0
    %v298 = vmax.f32 %v292, 0.0
    %v299 = vmax.f32 %v295, 0.0
    %v300 = vand.u32 2147483647, %v292
    %v301 = vand.u32 2147483647, %v295
    %v302 = vsub.f32 0.0, %v300
    %v303 = vsub.f32 0.0, %v301
    %v304 = vmul.f32 %v302, 1.442695
    %v305 = vpow.pop %v304
    %v306 = vmul.f32 %v303, 1.442695
    %v307 = vpow.pop %v306
    %v308 = vadd.f32 %v305, 1.0
    %v309 = vadd.f32 %v307, 1.0
    %v310 = vlog2.pop %v308
    %v311 = vmul.f32 %v310, 0.6931472
    %v312 = vlog2.pop %v309
    %v313 = vmul.f32 %v312, 0.6931472
    %v314 = vadd.f32 %v298, %v311
    %v315 = vadd.f32 %v299, %v313
    %v316 = vpack.c.bf16 %v315, %v314
    %v318 = vlaneseq
    %v319 = vshrl.u32 %v318, 7
    %v320 = vsub.s32 0, %v319
    %v321 = vrot.slane %v122, %v320
    %v339 = vunpack.c.l.b16 %v88
    %v340 = vunpack.c.l.b16 %v89
    %v341 = vunpack.c.l.b16 %v90
    %v342 = vunpack.c.l.b16 %v91
    %v343 = vunpack.c.l.b16 %v92
    %v344 = vunpack.c.l.b16 %v93
    %v345 = vunpack.c.l.b16 %v94
    %v346 = vunpack.c.l.b16 %v95
    %v347 = vunpack.c.l.b16 %v96
    %v348 = vunpack.c.l.b16 %v97
    %v349 = vunpack.c.l.b16 %v98
    %v350 = vunpack.c.l.b16 %v99
    %v351 = vunpack.c.l.b16 %v100
    %v352 = vunpack.c.l.b16 %v101
    %v353 = vunpack.c.l.b16 %v102
    %v354 = vunpack.c.l.b16 %v103
    %v355 = vpack.c.b16 %v340, %v339
    %v356 = vpack.c.b16 %v342, %v341
    %v357 = vpack.c.b16 %v344, %v343
    %v358 = vpack.c.b16 %v346, %v345
    %v359 = vpack.c.b16 %v348, %v347
    %v360 = vpack.c.b16 %v350, %v349
    %v361 = vpack.c.b16 %v352, %v351
    %v362 = vpack.c.b16 %v354, %v353
    %371 = vmatprep.subr.bf16.mxu0 0
    %372 = vmatpush1.bf16.msra.mxu0 %v355
    %373 = vmatprep.subr.bf16.mxu0 0
    %374 = vmatpush1.bf16.msra.mxu0 %v356
    %375 = vmatprep.subr.bf16.mxu0 0
    %376 = vmatpush1.bf16.msra.mxu0 %v357
    %377 = vmatprep.subr.bf16.mxu0 0
    %378 = vmatpush1.bf16.msra.mxu0 %v358
    %379 = vmatprep.subr.bf16.mxu0 0
    %380 = vmatpush1.bf16.msra.mxu0 %v359
    %381 = vmatprep.subr.bf16.mxu0 0
    %382 = vmatpush1.bf16.msra.mxu0 %v360
    %383 = vmatprep.subr.bf16.mxu0 0
    %384 = vmatpush1.bf16.msra.mxu0 %v361
    %385 = vmatprep.subr.bf16.mxu0 0
    %386 = vmatpush1.bf16.msra.mxu0 %v362
    %387 = vmatprep.subr.bf16.mxu0 0
    %388 = vmatpush1.bf16.msra.mxu0 0
    %389 = vmatprep.subr.bf16.mxu0 0
    %390 = vmatpush1.bf16.msra.mxu0 0
    %391 = vmatprep.subr.bf16.mxu0 0
    %392 = vmatpush1.bf16.msra.mxu0 0
    %393 = vmatprep.subr.bf16.mxu0 0
    %394 = vmatpush1.bf16.msra.mxu0 0
    %395 = vmatprep.subr.bf16.mxu0 0
    %396 = vmatpush1.bf16.msra.mxu0 0
    %397 = vmatprep.subr.bf16.mxu0 0
    %398 = vmatpush1.bf16.msra.mxu0 0
    %399 = vmatprep.subr.bf16.mxu0 0
    %400 = vmatpush1.bf16.msra.mxu0 0
    %401 = vmatprep.subr.bf16.mxu0 0
    %402 = vmatpush1.bf16.msra.mxu0 0
    %403 = vmatprep.mubr.bf16.mxu0 0
    %404 = vmatmul.mubr.bf16.gmra.mrb[0].mxu0 %v316
    %v405 = vpop.f32.mrb[0].mxu0
    %v406 = vadd.f32 %v321, %v405
    %v407 = vpop.f32.mrb[0].mxu0
    %v408 = vpop.f32.mrb[0].mxu0
    %v409 = vadd.f32 %v321, %v408
    %v410 = vpop.f32.mrb[0].mxu0
    %411 = vdwg.mxu0
    %v412 = vmax.f32 %v406, 0.0
    %v413 = vmax.f32 %v409, 0.0
    %v414 = vand.u32 2147483647, %v406
    %v415 = vand.u32 2147483647, %v409
    %v416 = vsub.f32 0.0, %v414
    %v417 = vsub.f32 0.0, %v415
    %v418 = vmul.f32 %v416, 1.442695
    %v419 = vpow.pop %v418
    %v420 = vmul.f32 %v417, 1.442695
    %v421 = vpow.pop %v420
    %v422 = vadd.f32 %v419, 1.0
    %v423 = vadd.f32 %v421, 1.0
    %v424 = vlog2.pop %v422
    %v425 = vmul.f32 %v424, 0.6931472
    %v426 = vlog2.pop %v423
    %v427 = vmul.f32 %v426, 0.6931472
    %v428 = vadd.f32 %v412, %v425
    %v429 = vadd.f32 %v413, %v427
    %v430 = vpack.c.bf16 %v429, %v428
    %v432 = vlaneseq
    %v433 = vshrl.u32 %v432, 7
    %v434 = vsub.s32 0, %v433
    %v435 = vrot.slane %v123, %v434
    %v453 = vunpack.c.l.b16 %v104
    %v454 = vunpack.c.l.b16 %v105
    %v455 = vunpack.c.l.b16 %v106
    %v456 = vunpack.c.l.b16 %v107
    %v457 = vunpack.c.l.b16 %v108
    %v458 = vunpack.c.l.b16 %v109
    %v459 = vunpack.c.l.b16 %v110
    %v460 = vunpack.c.l.b16 %v111
    %v461 = vunpack.c.l.b16 %v112
    %v462 = vunpack.c.l.b16 %v113
    %v463 = vunpack.c.l.b16 %v114
    %v464 = vunpack.c.l.b16 %v115
    %v465 = vunpack.c.l.b16 %v116
    %v466 = vunpack.c.l.b16 %v117
    %v467 = vunpack.c.l.b16 %v118
    %v468 = vunpack.c.l.b16 %v119
    %v469 = vpack.c.b16 %v454, %v453
    %v470 = vpack.c.b16 %v456, %v455
    %v471 = vpack.c.b16 %v458, %v457
    %v472 = vpack.c.b16 %v460, %v459
    %v473 = vpack.c.b16 %v462, %v461
    %v474 = vpack.c.b16 %v464, %v463
    %v475 = vpack.c.b16 %v466, %v465
    %v476 = vpack.c.b16 %v468, %v467
    %485 = vmatprep.subr.bf16.mxu0 0
    %486 = vmatpush1.bf16.msra.mxu0 %v469
    %487 = vmatprep.subr.bf16.mxu0 0
    %488 = vmatpush1.bf16.msra.mxu0 %v470
    %489 = vmatprep.subr.bf16.mxu0 0
    %490 = vmatpush1.bf16.msra.mxu0 %v471
    %491 = vmatprep.subr.bf16.mxu0 0
    %492 = vmatpush1.bf16.msra.mxu0 %v472
    %493 = vmatprep.subr.bf16.mxu0 0
    %494 = vmatpush1.bf16.msra.mxu0 %v473
    %495 = vmatprep.subr.bf16.mxu0 0
    %496 = vmatpush1.bf16.msra.mxu0 %v474
    %497 = vmatprep.subr.bf16.mxu0 0
    %498 = vmatpush1.bf16.msra.mxu0 %v475
    %499 = vmatprep.subr.bf16.mxu0 0
    %500 = vmatpush1.bf16.msra.mxu0 %v476
    %501 = vmatprep.subr.bf16.mxu0 0
    %502 = vmatpush1.bf16.msra.mxu0 0
    %503 = vmatprep.subr.bf16.mxu0 0
    %504 = vmatpush1.bf16.msra.mxu0 0
    %505 = vmatprep.subr.bf16.mxu0 0
    %506 = vmatpush1.bf16.msra.mxu0 0
    %507 = vmatprep.subr.bf16.mxu0 0
    %508 = vmatpush1.bf16.msra.mxu0 0
    %509 = vmatprep.subr.bf16.mxu0 0
    %510 = vmatpush1.bf16.msra.mxu0 0
    %511 = vmatprep.subr.bf16.mxu0 0
    %512 = vmatpush1.bf16.msra.mxu0 0
    %513 = vmatprep.subr.bf16.mxu0 0
    %514 = vmatpush1.bf16.msra.mxu0 0
    %515 = vmatprep.subr.bf16.mxu0 0
    %516 = vmatpush1.bf16.msra.mxu0 0
    %517 = vmatprep.mubr.bf16.mxu0 0
    %518 = vmatmul.mubr.bf16.gmra.mrb[0].mxu0 %v430
    %v519 = vpop.f32.mrb[0].mxu0
    %v520 = vadd.f32 %v435, %v519
    %v521 = vpop.f32.mrb[0].mxu0
    %v522 = vpop.f32.mrb[0].mxu0
    %v523 = vadd.f32 %v435, %v522
    %v524 = vpop.f32.mrb[0].mxu0
    %525 = vdwg.mxu0
    %vm526 = vcmask 64512
    %527 = vst.msk [vmem:[%s9] sm:$0xff] %vm526, %v520
    %528 = vst.msk [vmem:[%s9 + $0x8] sm:$0xff] %vm526, %v523
    // Predicated region
    $region50: #{model_latent_f.1} parent=1 // pred_check
      _
    $region51: #{model_latent_f.1} parent=1 // pred_check_branch
      %530 = sbr.rel (0) target = $region53
    $region52: #{model_latent_f.1} parent=1 // pred_region
      _
    $region53: #{model_latent_f.1} parent=1 // pred_fallthru
      _
    // Predicated region
    $region54: #{model_latent_f.1} parent=1 // pred_check
      _
    $region55: #{model_latent_f.1} parent=1 // pred_check_branch
      %532 = sbr.rel (0) target = $region57
    $region56: #{model_latent_f.1} parent=1 // pred_region
      _
    $region57: #{model_latent_f.1} parent=1 // pred_fallthru
      _
    %533 = vsyncpa [#allocation3], 1
    %534 = vsyncpa [#allocation5], 1

</llo_original>
